<compile_context>
chip_gen: v7x
topology: tpu7x:2x2x1
jax: 0.10.0
libtpu: 0.0.40
codegen_flags: <defaults>
</compile_context>

<pallas_src>
import functools

import numpy as np
import jax
import jax.numpy as jnp
from jax.experimental import pallas as pl
from jax.experimental.pallas import tpu as pltpu

# quantizer.to_sym constants used in PixDecoder.forward
X_MIN = -0.25
X_MAX = 0.5
L_LEVELS = 4
_INV_BIN = float((L_LEVELS - 1) / (X_MAX - X_MIN))   # = 4.0 ; multiply instead of divide

_BLOCK_BYTES_MULTI_TC = 8 * 1024 * 1024    # v7x: ~8 MiB f32 in / 2 MiB u8 out per block
_BLOCK_BYTES_SINGLE_TC = 16 * 1024 * 1024  # v5e/v6e: bigger blocks, grid is a serial loop anyway


def _rounding_sym_kernel(x_ref, sym_ref):
    """deltas = x - round(x); sym = to_sym(deltas, -0.25, 0.5, L=4) as uint8 in [0, 3]."""
    x = x_ref[...].astype(jnp.float32)          # in-kernel upcast: bf16 inputs stay one HBM pass
    deltas = x - jnp.round(x)                   # jnp.round == round-half-to-even == torch.round
    clamped = jnp.clip(deltas, X_MIN, X_MAX)
    sym = jnp.round((clamped - X_MIN) * _INV_BIN)
    sym_ref[...] = sym.astype(sym_ref.dtype)    # uint8 symbols (0..3) -> 4x less writeback traffic


def _num_tensorcores() -> int:
    """2 on v7x-class chips (two TensorCores per chip), else 1."""
    try:
        kind = jax.devices()[0].device_kind.lower()
    except Exception:
        return 1
    return 2 if ("v7" in kind or "tpu7" in kind) else 1


def _slab_shape(shape) -> tuple:
    """Zero-copy lane-dense 2-D view (rows, lane_w) of a tensor with `shape` (no pad, no slice)."""
    total = int(np.prod(shape))
    # Largest multiple of 128 (<= 2048) that divides the element count -> unmasked lane-dense vst.
    for lw in range(2048, 127, -128):
        if total % lw == 0:
            return total // lw, lw
    # Fallback (element count not divisible by 128): collapse leading dims, keep the original last
    # dim (full-dim block exemption). Stores may be lane-masked, but there are still zero extra
    # HBM passes — no pad and no output slice.
    last = int(shape[-1]) if len(shape) else 1
    return total // last, last


def _pick_block_rows(rows: int, lane_w: int, in_itemsize: int, n_cores: int,
                     target_block_bytes: int) -> int:
    """Block rows by byte budget; multiple of 32 unless the block covers all rows (exempt)."""
    def _ceil32(v):
        return -(-v // 32) * 32

    budget_rows = max(32, (target_block_bytes // (lane_w * in_itemsize)) // 32 * 32)
    block_rows = rows if rows <= budget_rows else budget_rows
    if n_cores > 1 and rows > 64:
        # Keep a small block count even so both v7x TensorCores get balanced "parallel" work.
        nblk = -(-rows // block_rows)
        if nblk % 2 == 1 and nblk <= 8:
            cand = _ceil32(-(-rows // (nblk + 1)))
            if 0 < cand < block_rows:
                block_rows = cand
    return block_rows


@functools.partial(jax.jit, static_argnames=("target_block_bytes",))
def rounding_symbols(x: jax.Array, *, target_block_bytes=None) -> jax.Array:
    """Pallas kernel wrapper: x is NCHW (any float dtype); returns uint8 symbols in [0, L-1]."""
    orig_shape = x.shape
    rows, lane_w = _slab_shape(orig_shape)
    in_itemsize = int(np.dtype(x.dtype).itemsize)
    n_cores = _num_tensorcores()
    budget = target_block_bytes or (
        _BLOCK_BYTES_MULTI_TC if n_cores > 1 else _BLOCK_BYTES_SINGLE_TC)
    block_rows = _pick_block_rows(rows, lane_w, in_itemsize, n_cores, budget)
    grid = (pl.cdiv(rows, block_rows),)         # ragged last block handled by Pallas masking

    # VMEM: double-buffered (in + out) blocks plus slack; cap below v7x's 64 MiB physical VMEM.
    in_block = block_rows * lane_w * in_itemsize
    out_block = block_rows * lane_w
    live = 2 * (in_block + out_block)
    vmem_cap = (48 if n_cores > 1 else 96) * 1024 * 1024
    vmem_limit = int(min(vmem_cap, max(32 * 1024 * 1024, live + 4 * 1024 * 1024)))

    x2 = x.reshape(rows, lane_w)                # zero-copy (contiguous) reshape

    out = pl.pallas_call(
        _rounding_sym_kernel,
        out_shape=jax.ShapeDtypeStruct((rows, lane_w), jnp.uint8),
        grid_spec=pltpu.PrefetchScalarGridSpec(
            num_scalar_prefetch=0,
            grid=grid,
            in_specs=[pl.BlockSpec((block_rows, lane_w), lambda i: (i, 0))],
            out_specs=pl.BlockSpec((block_rows, lane_w), lambda i: (i, 0)),
        ),
        compiler_params=pltpu.CompilerParams(
            dimension_semantics=("parallel",),
            vmem_limit_bytes=vmem_limit,
        ),
        cost_estimate=pl.CostEstimate(
            flops=5 * rows * lane_w,
            transcendentals=0,
            bytes_accessed=rows * lane_w * (in_itemsize + 1),
        ),
    )(x2)
    return out.reshape(orig_shape)


def group_2x2(x: jax.Array):
    """Group 2x2 phases of an NCHW tensor (matches PyTorch group_2x2 output order)."""
    n, c, h, w = x.shape
    r = x.reshape(n, c, h // 2, 2, w // 2, 2)
    return (r[:, :, :, 0, :, 0], r[:, :, :, 0, :, 1],
            r[:, :, :, 1, :, 0], r[:, :, :, 1, :, 1])


@jax.jit
def _round_group_2x2(y: jax.Array):
    """round(y) fused into the 2x2 phase split (one XLA pass over y; no eager intermediates)."""
    n, c, h, w = y.shape
    r = jnp.round(y).reshape(n, c, h // 2, 2, w // 2, 2)
    return (r[:, :, :, 0, :, 0], r[:, :, :, 0, :, 1],
            r[:, :, :, 1, :, 0], r[:, :, :, 1, :, 1])


def pix_decoder_forward(x: jax.Array, y: jax.Array, ctx, scale: int = 0, training: bool = False):
    """Concrete portion of PixDecoder.forward.

    Returns (bits_dict, ctx_cropped, rounding_syms, y_slices); bits_dict maps key -> (bits, size).
    """
    mode = "train" if training else "eval"

    # 1) rounding residual quantization (Pallas kernel, uint8 symbols in [0, 3])
    syms = rounding_symbols(x)

    # 2) uniform bits for the rounding residual: nll_sum = log(levels) * size; bits = nll_sum/log2
    size = int(np.prod(x.shape))
    bits_val = jnp.asarray(np.log(L_LEVELS) * size / np.log(2.0), dtype=jnp.float32)
    bits = {f"{mode}/{scale}_rounding": (bits_val, size)}

    # 3) crop ctx to x's spatial extent (skipped when ctx is the float 0.0 sentinel, as in torch)
    _, _, x_h, x_w = x.shape
    if isinstance(ctx, jax.Array):
        ctx = ctx[..., :x_h, :x_w]

    # 4) split y into its four 2x2 phases.  The round() torch applies to y before
    #    PixDecoder.forward is fused here (round is idempotent, so integer-valued y is unchanged).
    y_slices = _round_group_2x2(y)

    # 5) TODO(synk): PixDecoder.forward_probs (EDSR decoders / AtrousProbabilityClassifier /
    #    DiscretizedMixLogisticLoss in StrongPixDecoder) are learned sub-networks with no weights
    #    in the spec, so the logistic-mixture bits accumulation cannot be translated.
    return bits, ctx, syms, y_slices


@jax.jit
def _avg_pool_2x2(x: jax.Array) -> jax.Array:
    n, c, h, w = x.shape
    return x.reshape(n, c, h // 2, 2, w // 2, 2).mean(axis=(3, 5))


def average_downsamples(x: jax.Array, scale: int):
    """data.average_downsamples: pyramid of repeated 2x2 average pooling (glue)."""
    out = [x]
    for _ in range(scale):
        x = _avg_pool_2x2(x)
        out.append(x)
    return out


def compressor_forward(x: jax.Array, scale: int = 2, training: bool = False):
    """Concrete portion of Compressor.forward. Returns (bits_dict, per-scale aux)."""
    mode = "train" if training else "eval"
    downsampled = average_downsamples(x, scale)

    bits = {}
    # Uniform coding of round(downsampled[-1]) at 256 levels: in log-likelihood mode only the
    # size enters the bits, so the rounded tensor itself is never materialized (saves one pass).
    size0 = int(np.prod(downsampled[-1].shape))
    bits[f"{mode}/codes_0"] = (
        jnp.asarray(np.log(256.0) * size0 / np.log(2.0), dtype=jnp.float32), size0)

    ctx = 0.0                                   # first ctx_upsampler is nn.Identity on float 0.0
    aux = []
    for s, (x_lo, y_hi) in enumerate(zip(downsampled[::-1], downsampled[-2::-1])):
        # TODO(synk): ctx upsampling (edsr.Upsampler) and the ctx produced by
        # StrongPixDecoder.forward_probs are learned sub-networks not present in the spec;
        # only the concrete PixDecoder path runs per scale (round(y_hi) is fused downstream).
        dec_bits, ctx, syms, y_slices = pix_decoder_forward(
            x_lo, y_hi, ctx, scale=s, training=training)
        bits.update(dec_bits)
        aux.append((syms, y_slices))
    return bits, aux


if __name__ == "__main__":
    key = jax.random.PRNGKey(0)
    k1, k2, k3, k4, k5, k6 = jax.random.split(key, 6)

    # --- PixDecoder path: x low-res image, y 2x-res integer image, ctx feature map (cropped) ---
    N, C, H, W = 2, 4, 16, 16
    x = jax.random.uniform(k1, (N, C, H, W), jnp.float32, 0.0, 255.0)
    y = jax.random.randint(k2, (N, C, 2 * H, 2 * W), 0, 256).astype(jnp.float32)
    ctx = jax.random.normal(k3, (N, 8, H + 2, W + 2), dtype=jnp.float32)

    bits, ctx_out, syms, y_slices = pix_decoder_forward(x, y, ctx, scale=0, training=False)
    jax.block_until_ready(syms)

    # reference semantics (plain JAX)
    deltas = x - jnp.round(x)
    ref_syms = jnp.round(
        (jnp.clip(deltas, X_MIN, X_MAX) - X_MIN) * _INV_BIN).astype(jnp.uint8)
    assert syms.dtype == jnp.uint8 and syms.shape == x.shape
    assert bool(jnp.all(syms == ref_syms)), "rounding symbol mismatch"
    assert ctx_out.shape == (N, 8, H, W)
    ref_slices = (y[:, :, 0::2, 0::2], y[:, :, 0::2, 1::2],
                  y[:, :, 1::2, 0::2], y[:, :, 1::2, 1::2])
    for got, want in zip(y_slices, ref_slices):
        assert got.shape == (N, C, H, W)
        assert bool(jnp.all(got == want)), "group_2x2 mismatch"
    b, sz = bits["eval/0_rounding"]
    assert sz == N * C * H * W and abs(float(b) - 2.0 * sz) < 1e-2   # log2(4) = 2 bits/symbol

    # bf16 input exercises the in-kernel upcast (no wrapper-side astype pass)
    xb = x.astype(jnp.bfloat16)
    syms_b = rounding_symbols(xb)
    jax.block_until_ready(syms_b)
    x32 = xb.astype(jnp.float32)
    d32 = x32 - jnp.round(x32)
    ref_b = jnp.round((jnp.clip(d32, X_MIN, X_MAX) - X_MIN) * _INV_BIN).astype(jnp.uint8)
    assert bool(jnp.all(syms_b == ref_b)), "bf16 rounding symbol mismatch"

    # Ragged grid: rows not divisible by block_rows (tiny forced block budget) -> Pallas masked
    # partial final block, no pad / no output slice.  total = 128 * 97 -> lane_w = 128, rows = 97.
    xr = jax.random.uniform(k4, (1, 97, 8, 16), jnp.float32, 0.0, 255.0)
    syms_r = rounding_symbols(xr, target_block_bytes=32 * 1024)
    jax.block_until_ready(syms_r)
    dr = xr - jnp.round(xr)
    ref_r = jnp.round((jnp.clip(dr, X_MIN, X_MAX) - X_MIN) * _INV_BIN).astype(jnp.uint8)
    assert bool(jnp.all(syms_r == ref_r)), "ragged-block rounding symbol mismatch"

    # Non-128-divisible element count exercises the zero-copy (leading, last_dim) fallback slab.
    xn = jax.random.uniform(k5, (1, 3, 6, 10), jnp.float32, 0.0, 255.0)
    syms_n = rounding_symbols(xn)
    jax.block_until_ready(syms_n)
    dn = xn - jnp.round(xn)
    ref_n = jnp.round((jnp.clip(dn, X_MIN, X_MAX) - X_MIN) * _INV_BIN).astype(jnp.uint8)
    assert bool(jnp.all(syms_n == ref_n)), "narrow-lane rounding symbol mismatch"

    # --- Compressor-level path: average-downsample pyramid + per-scale decoders ---
    img = jnp.round(jax.random.uniform(k6, (2, 3, 32, 32), jnp.float32, 0.0, 255.0))
    cbits, aux = compressor_forward(img, scale=2, training=False)
    for syms_s, slices_s in aux:
        jax.block_until_ready(syms_s)
        for ys in slices_s:
            jax.block_until_ready(ys)
    assert set(cbits.keys()) == {"eval/codes_0", "eval/0_rounding", "eval/1_rounding"}
    assert cbits["eval/codes_0"][1] == 2 * 3 * 8 * 8

    print("KERNEL_OK")
</pallas_src>

<mosaic_0001>
module attributes {stable_mosaic.version = 11 : i64} {
  func.func @_rounding_sym_kernel(%arg0: i32, %arg1: memref<1x2048xf32, #tpu.memory_space<vmem>>, %arg2: memref<1x2048xi8, #tpu.memory_space<vmem>>) attributes {dimension_semantics = [#tpu.dimension_semantics<parallel>], iteration_bounds = array<i64: 1>, scalar_prefetch = 0 : i64, scratch_operands = 0 : i64, tpu.core_type = #tpu.core_type<tc>, window_params = [{transform_indices = @transform_0, window_bounds = array<i64: 1, 2048>}, {transform_indices = @transform_1, window_bounds = array<i64: 1, 2048>}]} {
    %c0 = arith.constant 0 : index
    %c0_0 = arith.constant 0 : index
    %0 = vector.load %arg1[%c0, %c0_0] : memref<1x2048xf32, #tpu.memory_space<vmem>>, vector<1x2048xf32>
    %1 = math.roundeven %0 : vector<1x2048xf32>
    %2 = arith.subf %0, %1 : vector<1x2048xf32>
    %cst = arith.constant -2.500000e-01 : f32
    %cst_1 = arith.constant 5.000000e-01 : f32
    %3 = vector.broadcast %cst : f32 to vector<1x2048xf32>
    %4 = arith.maximumf %3, %2 : vector<1x2048xf32>
    %5 = vector.broadcast %cst_1 : f32 to vector<1x2048xf32>
    %6 = arith.minimumf %5, %4 : vector<1x2048xf32>
    %cst_2 = arith.constant -2.500000e-01 : f32
    %7 = vector.broadcast %cst_2 : f32 to vector<1x2048xf32>
    %8 = arith.subf %6, %7 : vector<1x2048xf32>
    %cst_3 = arith.constant 4.000000e+00 : f32
    %9 = vector.broadcast %cst_3 : f32 to vector<1x2048xf32>
    %10 = arith.mulf %8, %9 : vector<1x2048xf32>
    %11 = math.roundeven %10 : vector<1x2048xf32>
    %12 = arith.fptoui %11 : vector<1x2048xf32> to vector<1x2048xi8>
    %c0_4 = arith.constant 0 : index
    %c0_5 = arith.constant 0 : index
    %13 = vector.load %arg2[%c0_4, %c0_5] : memref<1x2048xi8, #tpu.memory_space<vmem>>, vector<1x2048xi8>
    tpu.vector_store %arg2[%c0_4, %c0_5], %12 {strides = array<i32>} : memref<1x2048xi8, #tpu.memory_space<vmem>>, vector<1x2048xi8>,
    return
  }
  func.func @transform_0(%arg0: i32) -> (i32, i32) {
    %c0_i32 = arith.constant 0 : i32
    %c0_i32_0 = arith.constant 0 : i32
    return %arg0, %c0_i32 : i32, i32
  }
  func.func @transform_1(%arg0: i32) -> (i32, i32) {
    %c0_i32 = arith.constant 0 : i32
    %c0_i32_0 = arith.constant 0 : i32
    return %arg0, %c0_i32 : i32, i32
  }
}

</mosaic_0001>

<llo_original>
// kernel: rounding_symbols.1
$region0: #{rounding_symbols.1}
  #allocation0 [shape = 'u32[]', space=smem, size = 0x4, offset = 0x4, fixed_abs, tag = 'smem constant byte address 0x4 - core index']
  #allocation1 [shape = 'u32[144,128]{1,0:T(1,128)}', space=vmem, size = 0x12000, scoped, tag = 'internal scratch']
  %s0 = inlined_call_operand.vmem [shape: f32[1,2048], index: 0, kind: input, shape index: {}]
  %s1 = inlined_call_operand.vmem [shape: u8[1,2048], index: 1, kind: output, shape index: {}]
  %s2 = sld [smem:[#allocation0]]
  $region14: #{rounding_symbols.1} parent=0
    _
  %s4 = ssub.s32 1, %s2
  %s5 = scalar_select 0, %s4, %s2
  // Predicated region
  $region2: #{rounding_symbols.1} parent=0 // pred_check
    _
  $region3: #{rounding_symbols.1} parent=0 // pred_check_branch
    %7 = sbr.rel (0) target = $region5
  $region4: #{rounding_symbols.1} parent=0 // pred_region
    _
  $region5: #{rounding_symbols.1} parent=0 // pred_fallthru
    _
  %v8 = vld [vmem:[%s0] sm:$0xff]
  %v9 = vld [vmem:[%s0 + $0x8] sm:$0xff]
  %v10 = vround.ne.pseudo %v8
  %v11 = vround.ne.pseudo %v9
  %v12 = vsub.f32 %v8, %v10
  %v13 = vsub.f32 %v9, %v11
  %v14 = vmax.f32 %v12, -0.25
  %v15 = vmax.f32 %v13, -0.25
  %v16 = vmin.f32 %v14, 0.5
  %v17 = vmin.f32 %v15, 0.5
  %v18 = vsub.f32 %v16, -0.25
  %v19 = vsub.f32 %v17, -0.25
  %v20 = vmul.f32 %v18, 4.0
  %v21 = vmul.f32 %v19, 4.0
  %v22 = vround.ne.pseudo %v20
  %v23 = vround.ne.pseudo %v21
  %v26 = vlaneseq
  %v27 = vshrl.u32 %v26, 7
  %v28 = vsub.s32 0, %v27
  %v29 = vrot.slane %v22, %v28
  %v30 = vlaneseq
  %v31 = vshrl.u32 %v30, 7
  %v32 = vsub.s32 1, %v31
  %v33 = vrot.slane %v22, %v32
  %v34 = vlaneseq
  %v35 = vshrl.u32 %v34, 7
  %v36 = vsub.s32 2, %v35
  %v37 = vrot.slane %v22, %v36
  %v38 = vlaneseq
  %v39 = vshrl.u32 %v38, 7
  %v40 = vsub.s32 3, %v39
  %v41 = vrot.slane %v22, %v40
  %v42 = vlaneseq
  %v43 = vshrl.u32 %v42, 7
  %v44 = vsub.s32 4, %v43
  %v45 = vrot.slane %v22, %v44
  %v46 = vlaneseq
  %v47 = vshrl.u32 %v46, 7
  %v48 = vsub.s32 5, %v47
  %v49 = vrot.slane %v22, %v48
  %v50 = vlaneseq
  %v51 = vshrl.u32 %v50, 7
  %v52 = vsub.s32 6, %v51
  %v53 = vrot.slane %v22, %v52
  %v54 = vlaneseq
  %v55 = vshrl.u32 %v54, 7
  %v56 = vsub.s32 7, %v55
  %v57 = vrot.slane %v22, %v56
  %v58 = vlaneseq
  %v59 = vshrl.u32 %v58, 7
  %v60 = vsub.s32 0, %v59
  %v61 = vrot.slane %v23, %v60
  %v62 = vlaneseq
  %v63 = vshrl.u32 %v62, 7
  %v64 = vsub.s32 1, %v63
  %v65 = vrot.slane %v23, %v64
  %v66 = vlaneseq
  %v67 = vshrl.u32 %v66, 7
  %v68 = vsub.s32 2, %v67
  %v69 = vrot.slane %v23, %v68
  %v70 = vlaneseq
  %v71 = vshrl.u32 %v70, 7
  %v72 = vsub.s32 3, %v71
  %v73 = vrot.slane %v23, %v72
  %v74 = vlaneseq
  %v75 = vshrl.u32 %v74, 7
  %v76 = vsub.s32 4, %v75
  %v77 = vrot.slane %v23, %v76
  %v78 = vlaneseq
  %v79 = vshrl.u32 %v78, 7
  %v80 = vsub.s32 5, %v79
  %v81 = vrot.slane %v23, %v80
  %v82 = vlaneseq
  %v83 = vshrl.u32 %v82, 7
  %v84 = vsub.s32 6, %v83
  %v85 = vrot.slane %v23, %v84
  %v86 = vlaneseq
  %v87 = vshrl.u32 %v86, 7
  %v88 = vsub.s32 7, %v87
  %v89 = vrot.slane %v23, %v88
  %v106 = vtrunc.f32 %v29
  %v107 = vtrunc.f32 %v33
  %v108 = vtrunc.f32 %v37
  %v109 = vtrunc.f32 %v41
  %v110 = vtrunc.f32 %v45
  %v111 = vtrunc.f32 %v49
  %v112 = vtrunc.f32 %v53
  %v113 = vtrunc.f32 %v57
  %v114 = vtrunc.f32 %v61
  %v115 = vtrunc.f32 %v65
  %v116 = vtrunc.f32 %v69
  %v117 = vtrunc.f32 %v73
  %v118 = vtrunc.f32 %v77
  %v119 = vtrunc.f32 %v81
  %v120 = vtrunc.f32 %v85
  %v121 = vtrunc.f32 %v89
  %v122 = vpack.c.f32.eXmY %v106, %v106, 56
  %v126 = vpack.c.b8 %v122, %v122
  %v128 = vpack.c.f32.eXmY %v107, %v107, 56
  %v132 = vpack.c.b8 %v128, %v128
  %v134 = vpack.c.f32.eXmY %v108, %v108, 56
  %v138 = vpack.c.b8 %v134, %v134
  %v140 = vpack.c.f32.eXmY %v109, %v109, 56
  %v144 = vpack.c.b8 %v140, %v140
  %v146 = vpack.c.f32.eXmY %v110, %v110, 56
  %v150 = vpack.c.b8 %v146, %v146
  %v152 = vpack.c.f32.eXmY %v111, %v111, 56
  %v156 = vpack.c.b8 %v152, %v152
  %v158 = vpack.c.f32.eXmY %v112, %v112, 56
  %v162 = vpack.c.b8 %v158, %v158
  %v164 = vpack.c.f32.eXmY %v113, %v113, 56
  %v168 = vpack.c.b8 %v164, %v164
  %v170 = vpack.c.f32.eXmY %v114, %v114, 56
  %v174 = vpack.c.b8 %v170, %v170
  %v176 = vpack.c.f32.eXmY %v115, %v115, 56
  %v180 = vpack.c.b8 %v176, %v176
  %v182 = vpack.c.f32.eXmY %v116, %v116, 56
  %v186 = vpack.c.b8 %v182, %v182
  %v188 = vpack.c.f32.eXmY %v117, %v117, 56
  %v192 = vpack.c.b8 %v188, %v188
  %v194 = vpack.c.f32.eXmY %v118, %v118, 56
  %v198 = vpack.c.b8 %v194, %v194
  %v200 = vpack.c.f32.eXmY %v119, %v119, 56
  %v204 = vpack.c.b8 %v200, %v200
  %v206 = vpack.c.f32.eXmY %v120, %v120, 56
  %v210 = vpack.c.b8 %v206, %v206
  %v212 = vpack.c.f32.eXmY %v121, %v121, 56
  %v216 = vpack.c.b8 %v212, %v212
  %v218 = vcombine.low %v126, %v132
  %v219 = vcombine.low %v138, %v144
  %v220 = vcombine.low %v150, %v156
  %v221 = vcombine.low %v162, %v168
  %v223 = vunpack.c.l.s4 1966171168
  %v224 = vunpack.c.0.s8 %v223
  %v225 = vlaneseq
  %v226 = vshrl.u32 %v225, 7
  %v227 = vsub.s32 %v224, %v226
  %v228 = vrot.slane %v218, %v227
  %v230 = vunpack.c.l.s4 1966171168
  %v231 = vunpack.c.0.s8 %v230
  %v232 = vlaneseq
  %v233 = vshrl.u32 %v232, 7
  %v234 = vsub.s32 %v231, %v233
  %v235 = vrot.slane %v219, %v234
  %v237 = vunpack.c.l.s4 1966171168
  %v238 = vunpack.c.0.s8 %v237
  %v239 = vlaneseq
  %v240 = vshrl.u32 %v239, 7
  %v241 = vsub.s32 %v238, %v240
  %v242 = vrot.slane %v220, %v241
  %v244 = vunpack.c.l.s4 1966171168
  %v245 = vunpack.c.0.s8 %v244
  %v246 = vlaneseq
  %v247 = vshrl.u32 %v246, 7
  %v248 = vsub.s32 %v245, %v247
  %v249 = vrot.slane %v221, %v248
  %v250 = vcombine.low %v228, %v235
  %v251 = vcombine.low %v242, %v249
  %v253 = vunpack.c.l.s4 1966171168
  %v254 = vunpack.c.0.s8 %v253
  %v255 = vlaneseq
  %v256 = vshrl.u32 %v255, 7
  %v257 = vsub.s32 %v254, %v256
  %v258 = vrot.slane %v250, %v257
  %v260 = vunpack.c.l.s4 1966171168
  %v261 = vunpack.c.0.s8 %v260
  %v262 = vlaneseq
  %v263 = vshrl.u32 %v262, 7
  %v264 = vsub.s32 %v261, %v263
  %v265 = vrot.slane %v251, %v264
  %v266 = vcombine.low %v258, %v265
  %v267 = vcombine.low %v174, %v180
  %v268 = vcombine.low %v186, %v192
  %v269 = vcombine.low %v198, %v204
  %v270 = vcombine.low %v210, %v216
  %v272 = vunpack.c.l.s4 1966171168
  %v273 = vunpack.c.0.s8 %v272
  %v274 = vlaneseq
  %v275 = vshrl.u32 %v274, 7
  %v276 = vsub.s32 %v273, %v275
  %v277 = vrot.slane %v267, %v276
  %v279 = vunpack.c.l.s4 1966171168
  %v280 = vunpack.c.0.s8 %v279
  %v281 = vlaneseq
  %v282 = vshrl.u32 %v281, 7
  %v283 = vsub.s32 %v280, %v282
  %v284 = vrot.slane %v268, %v283
  %v286 = vunpack.c.l.s4 1966171168
  %v287 = vunpack.c.0.s8 %v286
  %v288 = vlaneseq
  %v289 = vshrl.u32 %v288, 7
  %v290 = vsub.s32 %v287, %v289
  %v291 = vrot.slane %v269, %v290
  %v293 = vunpack.c.l.s4 1966171168
  %v294 = vunpack.c.0.s8 %v293
  %v295 = vlaneseq
  %v296 = vshrl.u32 %v295, 7
  %v297 = vsub.s32 %v294, %v296
  %v298 = vrot.slane %v270, %v297
  %v299 = vcombine.low %v277, %v284
  %v300 = vcombine.low %v291, %v298
  %v302 = vunpack.c.l.s4 1966171168
  %v303 = vunpack.c.0.s8 %v302
  %v304 = vlaneseq
  %v305 = vshrl.u32 %v304, 7
  %v306 = vsub.s32 %v303, %v305
  %v307 = vrot.slane %v299, %v306
  %v309 = vunpack.c.l.s4 1966171168
  %v310 = vunpack.c.0.s8 %v309
  %v311 = vlaneseq
  %v312 = vshrl.u32 %v311, 7
  %v313 = vsub.s32 %v310, %v312
  %v314 = vrot.slane %v300, %v313
  %v315 = vcombine.low %v307, %v314
  %vm316 = vcmask 1040384
  %vm317 = vsmask.f32 0
  %vm318 = vmand %vm316, %vm317
  %vm319 = vcmask 1041409
  %vm320 = vsmask.f32 1024
  %vm321 = vmand %vm319, %vm320
  %vm322 = vmor %vm321, %vm318
  %vm323 = vcmask 1042434
  %vm324 = vsmask.f32 2048
  %vm325 = vmand %vm323, %vm324
  %vm326 = vmor %vm325, %vm322
  %vm327 = vcmask 1043459
  %vm328 = vsmask.f32 3072
  %vm329 = vmand %vm327, %vm328
  %vm330 = vmor %vm329, %vm326
  %vm331 = vcmask 1044484
  %vm332 = vsmask.f32 4096
  %vm333 = vmand %vm331, %vm332
  %vm334 = vmor %vm333, %vm330
  %vm335 = vcmask 1045509
  %vm336 = vsmask.f32 5120
  %vm337 = vmand %vm335, %vm336
  %vm338 = vmor %vm337, %vm334
  %vm339 = vcmask 1046534
  %vm340 = vsmask.f32 6144
  %vm341 = vmand %vm339, %vm340
  %vm342 = vmor %vm341, %vm338
  %vm343 = vcmask 1047559
  %vm344 = vsmask.f32 7168
  %vm345 = vmand %vm343, %vm344
  %vm346 = vmor %vm345, %vm342
  %v347 = vld [vmem:[%s1] sm:$0xff]
  %v348 = vsel %vm346, %v266, %v347
  %349 = vst [vmem:[%s1] sm:$0xff] %v348
  %v350 = vld [vmem:[%s1 + $0x8] sm:$0xff]
  %v351 = vsel %vm346, %v315, %v350
  %352 = vst [vmem:[%s1 + $0x8] sm:$0xff] %v351
  // Predicated region
  $region6: #{rounding_symbols.1} parent=0 // pred_check
    _
  $region7: #{rounding_symbols.1} parent=0 // pred_check_branch
    %354 = sbr.rel (0) target = $region9
  $region8: #{rounding_symbols.1} parent=0 // pred_region
    _
  $region9: #{rounding_symbols.1} parent=0 // pred_fallthru
    _
  // Predicated region
  $region10: #{rounding_symbols.1} parent=0 // pred_check
    _
  $region11: #{rounding_symbols.1} parent=0 // pred_check_branch
    %356 = sbr.rel (0) target = $region13
  $region12: #{rounding_symbols.1} parent=0 // pred_region
    _
  $region13: #{rounding_symbols.1} parent=0 // pred_fallthru
    _

</llo_original>
